<compile_context>
chip_gen: v5e
topology: v5e:2x2
jax: 0.10.0
libtpu: 0.0.40
codegen_flags: <defaults>
</compile_context>

<pallas_src>
import functools
import math

import jax
import jax.numpy as jnp
from jax.experimental import pallas as pl
from jax.experimental.pallas import tpu as pltpu


def _round_up(x, m):
    return ((x + m - 1) // m) * m


def _pick_tile(n, candidates=(512, 256, 128)):
    """Largest candidate tile that divides n, else the full extent."""
    for c in candidates:
        if n % c == 0:
            return c
    return n


# ---------------------------------------------------------------------------
# Kernel 1: fused QKV projection, head-major output layout.
#   x2d:       (M, C)        M = B * N_pad (batch folded into the matmul M dim)
#   wq/wk/wv:  (H, C, Dh)    head-major weight slices (wq pre-scaled by Dh^-0.5)
#   outputs:   q, k, v       each (H, M, Dh)
# ---------------------------------------------------------------------------
def _qkv_proj_kernel(x_ref, wq_ref, wk_ref, wv_ref, q_ref, k_ref, v_ref):
    x = x_ref[...]                                              # (TM, C)
    q_ref[0] = jnp.dot(x, wq_ref[0],
                       preferred_element_type=jnp.float32).astype(q_ref.dtype)
    k_ref[0] = jnp.dot(x, wk_ref[0],
                       preferred_element_type=jnp.float32).astype(k_ref.dtype)
    v_ref[0] = jnp.dot(x, wv_ref[0],
                       preferred_element_type=jnp.float32).astype(v_ref.dtype)


def _qkv_proj(x2d, wq, wk, wv):
    M, C = x2d.shape
    H, _, Dh = wq.shape
    TM = _pick_tile(M)
    assert M % TM == 0 and (TM % 8 == 0 or TM == M)
    out_sds = jax.ShapeDtypeStruct((H, M, Dh), x2d.dtype)
    return pl.pallas_call(
        _qkv_proj_kernel,
        out_shape=(out_sds, out_sds, out_sds),
        grid_spec=pltpu.PrefetchScalarGridSpec(
            num_scalar_prefetch=0,
            grid=(M // TM, H),
            in_specs=[
                pl.BlockSpec((TM, C), lambda m, h: (m, 0)),
                pl.BlockSpec((1, C, Dh), lambda m, h: (h, 0, 0)),
                pl.BlockSpec((1, C, Dh), lambda m, h: (h, 0, 0)),
                pl.BlockSpec((1, C, Dh), lambda m, h: (h, 0, 0)),
            ],
            out_specs=(
                pl.BlockSpec((1, TM, Dh), lambda m, h: (h, m, 0)),
                pl.BlockSpec((1, TM, Dh), lambda m, h: (h, m, 0)),
                pl.BlockSpec((1, TM, Dh), lambda m, h: (h, m, 0)),
            ),
        ),
        compiler_params=pltpu.CompilerParams(
            dimension_semantics=("parallel", "parallel")),
    )(x2d, wq, wk, wv)


# ---------------------------------------------------------------------------
# Kernel 2: flash-style attention + per-head output-projection accumulation.
# grid = (B, q_tiles, H, kv_tiles); output block (TQ, C) is resident across the
# two trailing ("arbitrary") axes -> f32 accumulator pattern.
# ---------------------------------------------------------------------------
def _flash_attn_proj_kernel(q_ref, k_ref, v_ref, wp_ref, b_ref, o_ref,
                            m_sc, l_sc, acc_sc, proj_sc,
                            *, n_valid, block_k, masked):
    h = pl.program_id(2)
    ki = pl.program_id(3)
    nh = pl.num_programs(2)
    nk = pl.num_programs(3)

    @pl.when(jnp.logical_and(h == 0, ki == 0))
    def _():  # init the projection accumulator (bias folded in) per (b, q-tile)
        proj_sc[...] = jnp.broadcast_to(b_ref[...], proj_sc.shape)

    @pl.when(ki == 0)
    def _():  # reset the online-softmax state once per head
        m_sc[...] = jnp.full(m_sc.shape, -jnp.inf, jnp.float32)
        l_sc[...] = jnp.zeros(l_sc.shape, jnp.float32)
        acc_sc[...] = jnp.zeros(acc_sc.shape, jnp.float32)

    qh = q_ref[0]                                               # (TQ, Dh), pre-scaled
    kh = k_ref[0]                                               # (TK, Dh)
    vh = v_ref[0]                                               # (TK, Dh)

    # q @ k^T: contract the trailing dims directly, no explicit transpose.
    s = jax.lax.dot_general(qh, kh, (((1,), (1,)), ((), ())),
                            preferred_element_type=jnp.float32)  # (TQ, TK) f32

    if masked:  # static branch: only compiled when the token axis was padded
        key_pos = ki * block_k + jax.lax.broadcasted_iota(jnp.int32, s.shape, 1)
        s = jnp.where(key_pos < n_valid, s, -jnp.inf)

    m_prev = m_sc[...]
    m_new = jnp.maximum(m_prev, s.max(axis=-1, keepdims=True))
    alpha = jnp.exp(m_prev - m_new)                              # EUP
    p = jnp.exp(s - m_new)                                       # unnormalized

    l_sc[...] = alpha * l_sc[...] + p.sum(axis=-1, keepdims=True)
    acc_sc[...] = alpha * acc_sc[...] + jnp.dot(
        p.astype(vh.dtype), vh, preferred_element_type=jnp.float32)
    m_sc[...] = m_new

    @pl.when(ki == nk - 1)
    def _():  # finalize this head and fold its output projection in
        inv_l = pl.reciprocal(l_sc[...], approx=True)            # EUP, (TQ, 1)
        o_h = (acc_sc[...] * inv_l).astype(wp_ref.dtype)         # (TQ, Dh)
        proj_sc[...] += jnp.dot(o_h, wp_ref[0],
                                preferred_element_type=jnp.float32)

    @pl.when(jnp.logical_and(h == nh - 1, ki == nk - 1))
    def _():  # single write, once per (batch, q-tile)
        o_ref[...] = proj_sc[...].astype(o_ref.dtype)


def attention_pallas(x, w_qkv, w_proj, b_proj, *, num_heads,
                     q_block=None, kv_block=None):
    """x: (B, N, C); w_qkv: (C, 3C); w_proj: (C, C); b_proj: (C,)."""
    B, N, C = x.shape
    assert C % num_heads == 0
    H = num_heads
    Dh = C // H
    scale = Dh ** -0.5

    # Sequence tiling; arbitrary N is supported via zero-padding + key masking.
    TQ = q_block if q_block is not None else (128 if N >= 128 else _round_up(N, 8))
    TK = kv_block if kv_block is not None else (128 if N >= 128 else _round_up(N, 8))
    assert TQ % 8 == 0 and TK % 8 == 0
    N_pad = _round_up(N, math.lcm(TQ, TK))
    masked = N_pad != N
    if masked:
        x = jnp.pad(x, ((0, 0), (0, N_pad - N), (0, 0)))
    NQ = N_pad // TQ
    NK = N_pad // TK
    M = B * N_pad

    # One-time weight layout prep (outside the kernels; would be cached in a
    # real deployment). Head-major slices; softmax scale folded into Wq.
    wq = (jnp.transpose(w_qkv[:, 0 * C:1 * C].reshape(C, H, Dh), (1, 0, 2))
          * scale).astype(x.dtype)                               # (H, C, Dh)
    wk = jnp.transpose(w_qkv[:, 1 * C:2 * C].reshape(C, H, Dh),
                       (1, 0, 2)).astype(x.dtype)                # (H, C, Dh)
    wv = jnp.transpose(w_qkv[:, 2 * C:3 * C].reshape(C, H, Dh),
                       (1, 0, 2)).astype(x.dtype)                # (H, C, Dh)
    wp = w_proj.reshape(H, Dh, C).astype(x.dtype)                # (H, Dh, C)
    b2d = b_proj.reshape(1, C).astype(jnp.float32)               # folded in f32

    # Kernel 1: qkv projection with batch folded into the matmul M dimension.
    x2d = x.reshape(M, C)
    q, k, v = _qkv_proj(x2d, wq, wk, wv)                         # (H, M, Dh) x3

    kernel = functools.partial(_flash_attn_proj_kernel,
                               n_valid=N, block_k=TK, masked=masked)

    out2d = pl.pallas_call(
        kernel,
        out_shape=jax.ShapeDtypeStruct((M, C), x.dtype),
        grid_spec=pltpu.PrefetchScalarGridSpec(
            num_scalar_prefetch=0,
            grid=(B, NQ, H, NK),
            in_specs=[
                pl.BlockSpec((1, TQ, Dh),
                             lambda b, qi, h, ki: (h, b * NQ + qi, 0)),  # q
                pl.BlockSpec((1, TK, Dh),
                             lambda b, qi, h, ki: (h, b * NK + ki, 0)),  # k
                pl.BlockSpec((1, TK, Dh),
                             lambda b, qi, h, ki: (h, b * NK + ki, 0)),  # v
                pl.BlockSpec((1, Dh, C),
                             lambda b, qi, h, ki: (h, 0, 0)),            # w_proj
                pl.BlockSpec((1, C),
                             lambda b, qi, h, ki: (0, 0)),               # bias
            ],
            out_specs=pl.BlockSpec((TQ, C),
                                   lambda b, qi, h, ki: (b * NQ + qi, 0)),
            scratch_shapes=[
                pltpu.VMEM((TQ, 1), jnp.float32),    # running max m
                pltpu.VMEM((TQ, 1), jnp.float32),    # running sum l
                pltpu.VMEM((TQ, Dh), jnp.float32),   # per-head attn accumulator
                pltpu.VMEM((TQ, C), jnp.float32),    # projection accumulator
            ],
        ),
        compiler_params=pltpu.CompilerParams(
            dimension_semantics=("parallel", "parallel",
                                 "arbitrary", "arbitrary")),
    )(q, k, v, wp, b2d)

    out = out2d.reshape(B, N_pad, C)
    if masked:
        out = out[:, :N, :]
    return out


def attention_reference(x, w_qkv, w_proj, b_proj, *, num_heads):
    """Pure-JAX reference mirroring the PyTorch forward (for verification)."""
    B, N, C = x.shape
    head_dim = C // num_heads
    scale = head_dim ** -0.5
    qkv = x @ w_qkv                                              # (B, N, 3C)
    qkv = qkv.reshape(B, N, 3, num_heads, head_dim)
    qkv = jnp.transpose(qkv, (2, 0, 3, 1, 4))                    # (3, B, H, N, Dh)
    q, k, v = qkv[0], qkv[1], qkv[2]
    attn = (q * scale) @ jnp.swapaxes(k, -2, -1)                 # (B, H, N, N)
    attn = jax.nn.softmax(attn, axis=-1)
    out = attn @ v                                               # (B, H, N, Dh)
    out = jnp.transpose(out, (0, 2, 1, 3)).reshape(B, N, C)
    return out @ w_proj + b_proj


def _make_inputs(key, B, N, C, dtype=jnp.float32):
    k1, k2, k3, k4, key = jax.random.split(key, 5)
    x = jax.random.normal(k1, (B, N, C), dtype)
    w_qkv = (jax.random.normal(k2, (C, 3 * C), jnp.float32) * (C ** -0.5)).astype(dtype)
    w_proj = (jax.random.normal(k3, (C, C), jnp.float32) * (C ** -0.5)).astype(dtype)
    b_proj = (jax.random.normal(k4, (C,), jnp.float32) * 0.02).astype(dtype)
    return (x, w_qkv, w_proj, b_proj), key


if __name__ == "__main__":
    key = jax.random.PRNGKey(0)

    # --- Test 1: tiny shapes (B=2, N=8, C=32, 4 heads), f32 -----------------
    (x, w_qkv, w_proj, b_proj), key = _make_inputs(key, 2, 8, 32)
    out = jax.block_until_ready(
        attention_pallas(x, w_qkv, w_proj, b_proj, num_heads=4))
    ref = attention_reference(x, w_qkv, w_proj, b_proj, num_heads=4)
    assert out.shape == (2, 8, 32)
    # Tolerance allows for the EUP approximate reciprocal in the softmax denom.
    assert jnp.allclose(out, ref, atol=5e-3, rtol=5e-3), "f32 small-shape mismatch"

    # --- Test 2: non-divisible N (Twins stage-4-like N=49), padding + mask --
    (x, w_qkv, w_proj, b_proj), key = _make_inputs(key, 2, 49, 64)
    out = jax.block_until_ready(
        attention_pallas(x, w_qkv, w_proj, b_proj, num_heads=2))
    ref = attention_reference(x, w_qkv, w_proj, b_proj, num_heads=2)
    assert out.shape == (2, 49, 64)
    assert jnp.allclose(out, ref, atol=5e-3, rtol=5e-3), "f32 padded mismatch"

    # --- Test 3: multi-tile flash path (B=2, N=256, C=64, 2 heads), f32 -----
    (x, w_qkv, w_proj, b_proj), key = _make_inputs(key, 2, 256, 64)
    out = jax.block_until_ready(
        attention_pallas(x, w_qkv, w_proj, b_proj, num_heads=2,
                         q_block=128, kv_block=128))
    ref = attention_reference(x, w_qkv, w_proj, b_proj, num_heads=2)
    assert jnp.allclose(out, ref, atol=5e-3, rtol=5e-3), "f32 tiled mismatch"

    # --- Test 4: multi-tile + padding (N=200 -> N_pad=256), f32 -------------
    (x2, w_qkv2, w_proj2, b_proj2), key = _make_inputs(key, 2, 200, 64)
    out2 = jax.block_until_ready(
        attention_pallas(x2, w_qkv2, w_proj2, b_proj2, num_heads=2))
    ref2 = attention_reference(x2, w_qkv2, w_proj2, b_proj2, num_heads=2)
    assert out2.shape == (2, 200, 64)
    assert jnp.allclose(out2, ref2, atol=5e-3, rtol=5e-3), "f32 padded+tiled mismatch"

    # --- Test 5: bf16 MXU path (test-3 shapes), vs f32 reference ------------
    out_bf16 = jax.block_until_ready(
        attention_pallas(x.astype(jnp.bfloat16), w_qkv.astype(jnp.bfloat16),
                         w_proj.astype(jnp.bfloat16), b_proj.astype(jnp.bfloat16),
                         num_heads=2, q_block=128, kv_block=128))
    assert jnp.allclose(out_bf16.astype(jnp.float32), ref,
                        atol=5e-2, rtol=5e-2), "bf16 mismatch"

    print("KERNEL_OK")
</pallas_src>

<mosaic_0001>
module attributes {stable_mosaic.version = 11 : i64} {
  func.func @_qkv_proj_kernel(%arg0: i32, %arg1: i32, %arg2: memref<16x32xf32, #tpu.memory_space<vmem>>, %arg3: memref<1x32x8xf32, #tpu.memory_space<vmem>>, %arg4: memref<1x32x8xf32, #tpu.memory_space<vmem>>, %arg5: memref<1x32x8xf32, #tpu.memory_space<vmem>>, %arg6: memref<1x16x8xf32, #tpu.memory_space<vmem>>, %arg7: memref<1x16x8xf32, #tpu.memory_space<vmem>>, %arg8: memref<1x16x8xf32, #tpu.memory_space<vmem>>) attributes {dimension_semantics = [#tpu.dimension_semantics<parallel>, #tpu.dimension_semantics<parallel>], iteration_bounds = array<i64: 1, 4>, scalar_prefetch = 0 : i64, scratch_operands = 0 : i64, tpu.core_type = #tpu.core_type<tc>, window_params = [{transform_indices = @transform_0, window_bounds = array<i64: 16, 32>}, {transform_indices = @transform_1, window_bounds = array<i64: 1, 32, 8>}, {transform_indices = @transform_2, window_bounds = array<i64: 1, 32, 8>}, {transform_indices = @transform_3, window_bounds = array<i64: 1, 32, 8>}, {transform_indices = @transform_4, window_bounds = array<i64: 1, 16, 8>}, {transform_indices = @transform_5, window_bounds = array<i64: 1, 16, 8>}, {transform_indices = @transform_6, window_bounds = array<i64: 1, 16, 8>}]} {
    %c0 = arith.constant 0 : index
    %c0_0 = arith.constant 0 : index
    %0 = vector.load %arg2[%c0, %c0_0] : memref<16x32xf32, #tpu.memory_space<vmem>>, vector<16x32xf32>
    %c0_1 = arith.constant 0 : index
    %c0_2 = arith.constant 0 : index
    %c0_3 = arith.constant 0 : index
    %1 = vector.load %arg3[%c0_1, %c0_2, %c0_3] : memref<1x32x8xf32, #tpu.memory_space<vmem>>, vector<1x32x8xf32>
    %2 = vector.shape_cast %1 : vector<1x32x8xf32> to vector<32x8xf32>
    %cst = arith.constant dense<0.000000e+00> : vector<16x8xf32>
    %3 = tpu.matmul %0, %2, %cst {dimension_numbers = #tpu.dot_dimension_numbers<[1], [0], [0], [1], [0, 0, 1, 1], [], []>} : vector<16x32xf32>, vector<32x8xf32>, vector<16x8xf32> -> vector<16x8xf32>
    %c0_4 = arith.constant 0 : index
    %c0_5 = arith.constant 0 : index
    %c0_6 = arith.constant 0 : index
    %4 = vector.load %arg6[%c0_4, %c0_5, %c0_6] : memref<1x16x8xf32, #tpu.memory_space<vmem>>, vector<1x16x8xf32>
    %5 = vector.shape_cast %4 : vector<1x16x8xf32> to vector<16x8xf32>
    %6 = vector.shape_cast %3 : vector<16x8xf32> to vector<1x16x8xf32>
    tpu.vector_store %arg6[%c0_4, %c0_5, %c0_6], %6 {strides = array<i32>} : memref<1x16x8xf32, #tpu.memory_space<vmem>>, vector<1x16x8xf32>,
    %c0_7 = arith.constant 0 : index
    %c0_8 = arith.constant 0 : index
    %c0_9 = arith.constant 0 : index
    %7 = vector.load %arg4[%c0_7, %c0_8, %c0_9] : memref<1x32x8xf32, #tpu.memory_space<vmem>>, vector<1x32x8xf32>
    %8 = vector.shape_cast %7 : vector<1x32x8xf32> to vector<32x8xf32>
    %cst_10 = arith.constant dense<0.000000e+00> : vector<16x8xf32>
    %9 = tpu.matmul %0, %8, %cst_10 {dimension_numbers = #tpu.dot_dimension_numbers<[1], [0], [0], [1], [0, 0, 1, 1], [], []>} : vector<16x32xf32>, vector<32x8xf32>, vector<16x8xf32> -> vector<16x8xf32>
    %c0_11 = arith.constant 0 : index
    %c0_12 = arith.constant 0 : index
    %c0_13 = arith.constant 0 : index
    %10 = vector.load %arg7[%c0_11, %c0_12, %c0_13] : memref<1x16x8xf32, #tpu.memory_space<vmem>>, vector<1x16x8xf32>
    %11 = vector.shape_cast %10 : vector<1x16x8xf32> to vector<16x8xf32>
    %12 = vector.shape_cast %9 : vector<16x8xf32> to vector<1x16x8xf32>
    tpu.vector_store %arg7[%c0_11, %c0_12, %c0_13], %12 {strides = array<i32>} : memref<1x16x8xf32, #tpu.memory_space<vmem>>, vector<1x16x8xf32>,
    %c0_14 = arith.constant 0 : index
    %c0_15 = arith.constant 0 : index
    %c0_16 = arith.constant 0 : index
    %13 = vector.load %arg5[%c0_14, %c0_15, %c0_16] : memref<1x32x8xf32, #tpu.memory_space<vmem>>, vector<1x32x8xf32>
    %14 = vector.shape_cast %13 : vector<1x32x8xf32> to vector<32x8xf32>
    %cst_17 = arith.constant dense<0.000000e+00> : vector<16x8xf32>
    %15 = tpu.matmul %0, %14, %cst_17 {dimension_numbers = #tpu.dot_dimension_numbers<[1], [0], [0], [1], [0, 0, 1, 1], [], []>} : vector<16x32xf32>, vector<32x8xf32>, vector<16x8xf32> -> vector<16x8xf32>
    %c0_18 = arith.constant 0 : index
    %c0_19 = arith.constant 0 : index
    %c0_20 = arith.constant 0 : index
    %16 = vector.load %arg8[%c0_18, %c0_19, %c0_20] : memref<1x16x8xf32, #tpu.memory_space<vmem>>, vector<1x16x8xf32>
    %17 = vector.shape_cast %16 : vector<1x16x8xf32> to vector<16x8xf32>
    %18 = vector.shape_cast %15 : vector<16x8xf32> to vector<1x16x8xf32>
    tpu.vector_store %arg8[%c0_18, %c0_19, %c0_20], %18 {strides = array<i32>} : memref<1x16x8xf32, #tpu.memory_space<vmem>>, vector<1x16x8xf32>,
    return
  }
  func.func @transform_0(%arg0: i32, %arg1: i32) -> (i32, i32) {
    %c0_i32 = arith.constant 0 : i32
    %c0_i32_0 = arith.constant 0 : i32
    return %arg0, %c0_i32 : i32, i32
  }
  func.func @transform_1(%arg0: i32, %arg1: i32) -> (i32, i32, i32) {
    %c0_i32 = arith.constant 0 : i32
    %c0_i32_0 = arith.constant 0 : i32
    %c0_i32_1 = arith.constant 0 : i32
    return %arg1, %c0_i32, %c0_i32_0 : i32, i32, i32
  }
  func.func @transform_2(%arg0: i32, %arg1: i32) -> (i32, i32, i32) {
    %c0_i32 = arith.constant 0 : i32
    %c0_i32_0 = arith.constant 0 : i32
    %c0_i32_1 = arith.constant 0 : i32
    return %arg1, %c0_i32, %c0_i32_0 : i32, i32, i32
  }
  func.func @transform_3(%arg0: i32, %arg1: i32) -> (i32, i32, i32) {
    %c0_i32 = arith.constant 0 : i32
    %c0_i32_0 = arith.constant 0 : i32
    %c0_i32_1 = arith.constant 0 : i32
    return %arg1, %c0_i32, %c0_i32_0 : i32, i32, i32
  }
  func.func @transform_4(%arg0: i32, %arg1: i32) -> (i32, i32, i32) {
    %c0_i32 = arith.constant 0 : i32
    %c0_i32_0 = arith.constant 0 : i32
    return %arg1, %arg0, %c0_i32 : i32, i32, i32
  }
  func.func @transform_5(%arg0: i32, %arg1: i32) -> (i32, i32, i32) {
    %c0_i32 = arith.constant 0 : i32
    %c0_i32_0 = arith.constant 0 : i32
    return %arg1, %arg0, %c0_i32 : i32, i32, i32
  }
  func.func @transform_6(%arg0: i32, %arg1: i32) -> (i32, i32, i32) {
    %c0_i32 = arith.constant 0 : i32
    %c0_i32_0 = arith.constant 0 : i32
    return %arg1, %arg0, %c0_i32 : i32, i32, i32
  }
}

</mosaic_0001>

<llo_original>
// kernel: tpu_custom_call.1
$region0: #{tpu_custom_call.1}
  #allocation0 [shape = 'u32[]', space=smem, size = 0x4, offset = 0x4, fixed_abs, tag = 'smem constant byte address 0x4 - core index']
  #allocation1 [shape = 'u32[72,128]{1,0:T(1,128)}', space=vmem, size = 0x9000, scoped, tag = 'internal scratch']
  %s0 = inlined_call_operand.vmem [shape: f32[16,32], index: 0, kind: input, shape index: {}]
  %s1 = inlined_call_operand.vmem [shape: f32[4,32,8], index: 1, kind: input, shape index: {}]
  %s2 = inlined_call_operand.vmem [shape: f32[4,32,8], index: 2, kind: input, shape index: {}]
  %s3 = inlined_call_operand.vmem [shape: f32[4,32,8], index: 3, kind: input, shape index: {}]
  %s4 = inlined_call_operand.vmem [shape: f32[4,16,8], index: 4, kind: output, shape index: {0}]
  %s5 = inlined_call_operand.vmem [shape: f32[4,16,8], index: 5, kind: output, shape index: {1}]
  %s6 = inlined_call_operand.vmem [shape: f32[4,16,8], index: 6, kind: output, shape index: {2}]
  %7 = xla_tuple %s4, %s5, %s6
  %s8 = sld [smem:[#allocation0]]
  $region65: #{tpu_custom_call.1} parent=0
    _
  %s10 = ssub.s32 1, %s8
  %s11 = scalar_select 0, %s10, %s8
  loop: start=0, step=1, limit=6
  $region2: #{tpu_custom_call.1} parent=0 // loop_pre_header
    _
  $region3: #{tpu_custom_call.1} parent=0 // loop_header
    %s13 = sphi 0, %s17
    %p14 = scmp.ge.s32.totalorder %s13, 6
    %s20 = sphi 0, %s32
    %s21 = sphi 0, %s28
    %s22 = sphi 0, %s20
    %s23 = sphi 0, %s21
    %s24 = sphi 0, %s22
    %s25 = sphi 0, %s23
    %s35 = sphi 0, %s37
    %s38 = sphi 0, %s35
    %s39 = sphi 0, %s38
    %s55 = sphi 0, %s39
    %s61 = sphi 0, %s63
    %s64 = sphi 0, %s61
    %s65 = sphi 0, %s64
    %s81 = sphi 0, %s65
    %s87 = sphi 0, %s89
    %s90 = sphi 0, %s87
    %s91 = sphi 0, %s90
    %s107 = sphi 0, %s91
    %s113 = sphi 0, %s115
    %s116 = sphi 0, %s113
    %s117 = sphi 0, %s116
    %s133 = sphi 0, %s117
    %s141 = sphi 0, %s143
    %s144 = sphi 0, %s141
    %s145 = sphi 0, %s144
    %s161 = sphi 0, %s145
    %s169 = sphi 0, %s171
    %s172 = sphi 0, %s169
    %s173 = sphi 0, %s172
    %s189 = sphi 0, %s173
    %s197 = sphi 0, %s199
    %s200 = sphi 0, %s197
    %s201 = sphi 0, %s200
    %s217 = sphi 0, %s201
  $region4: #{tpu_custom_call.1} parent=0 // loop_header_branch
    %16 = sbr.rel (%p14) target = $region8
  $region5: #{tpu_custom_call.1} parent=0 // loop_body
    %s18 = ssub.s32 %s13, 1
    %s19 = ssub.s32 %s13, 2
    %s26 = sadd.s32 1, %s21
    %p27 = scmp.ge.s32.totalorder %s26, 4
    %s28 = scalar_select %p27, 0, %s26
    %s29 = sadd.s32 1, %s20
    %s30 = scalar_select %p27, %s29, %s20
    %p31 = scmp.ge.s32.totalorder %s30, 1
    %s32 = scalar_select %p31, 0, %s30
    %s33 = ssub.s32 %s20, %s32
    %p34 = scmp.eq.s32.totalorder %s33, 0
    %s36 = sadd.s32 %s35, 1
    %s37 = scalar_select %p34, %s35, %s36
    %p40 = pneg %p34
    %p41 = scmp.eq.s32.totalorder %s13, 3
    %p42 = por %p40, %p41
    %p43 = scmp.ne.s32.totalorder %s35, %s38
    %p44 = scmp.eq.s32.totalorder %s13, 0
    %p45 = por %p43, %p44
    %p46 = scmp.ne.s32.totalorder %s35, %s38
    %p47 = scmp.eq.s32.totalorder %s18, 3
    %p48 = por %p46, %p47
    %p49 = scmp.ne.s32.totalorder %s38, %s39
    %p50 = scmp.eq.s32.totalorder %s18, 0
    %p51 = por %p49, %p50
    %p52 = scmp.ne.s32.totalorder %s38, %s39
    %p53 = scmp.eq.s32.totalorder %s19, 3
    %p54 = por %p52, %p53
    %p56 = scmp.ne.s32.totalorder %s39, %s55
    %p57 = scmp.eq.s32.totalorder %s19, 0
    %p58 = por %p56, %p57
    %s59 = ssub.s32 %s21, %s28
    %p60 = scmp.eq.s32.totalorder %s59, 0
    %s62 = sadd.s32 %s61, 1
    %s63 = scalar_select %p60, %s61, %s62
    %p66 = pneg %p60
    %p67 = scmp.eq.s32.totalorder %s13, 3
    %p68 = por %p66, %p67
    %p69 = scmp.ne.s32.totalorder %s61, %s64
    %p70 = scmp.eq.s32.totalorder %s13, 0
    %p71 = por %p69, %p70
    %p72 = scmp.ne.s32.totalorder %s61, %s64
    %p73 = scmp.eq.s32.totalorder %s18, 3
    %p74 = por %p72, %p73
    %p75 = scmp.ne.s32.totalorder %s64, %s65
    %p76 = scmp.eq.s32.totalorder %s18, 0
    %p77 = por %p75, %p76
    %p78 = scmp.ne.s32.totalorder %s64, %s65
    %p79 = scmp.eq.s32.totalorder %s19, 3
    %p80 = por %p78, %p79
    %p82 = scmp.ne.s32.totalorder %s65, %s81
    %p83 = scmp.eq.s32.totalorder %s19, 0
    %p84 = por %p82, %p83
    %s85 = ssub.s32 %s21, %s28
    %p86 = scmp.eq.s32.totalorder %s85, 0
    %s88 = sadd.s32 %s87, 1
    %s89 = scalar_select %p86, %s87, %s88
    %p92 = pneg %p86
    %p93 = scmp.eq.s32.totalorder %s13, 3
    %p94 = por %p92, %p93
    %p95 = scmp.ne.s32.totalorder %s87, %s90
    %p96 = scmp.eq.s32.totalorder %s13, 0
    %p97 = por %p95, %p96
    %p98 = scmp.ne.s32.totalorder %s87, %s90
    %p99 = scmp.eq.s32.totalorder %s18, 3
    %p100 = por %p98, %p99
    %p101 = scmp.ne.s32.totalorder %s90, %s91
    %p102 = scmp.eq.s32.totalorder %s18, 0
    %p103 = por %p101, %p102
    %p104 = scmp.ne.s32.totalorder %s90, %s91
    %p105 = scmp.eq.s32.totalorder %s19, 3
    %p106 = por %p104, %p105
    %p108 = scmp.ne.s32.totalorder %s91, %s107
    %p109 = scmp.eq.s32.totalorder %s19, 0
    %p110 = por %p108, %p109
    %s111 = ssub.s32 %s21, %s28
    %p112 = scmp.eq.s32.totalorder %s111, 0
    %s114 = sadd.s32 %s113, 1
    %s115 = scalar_select %p112, %s113, %s114
    %p118 = pneg %p112
    %p119 = scmp.eq.s32.totalorder %s13, 3
    %p120 = por %p118, %p119
    %p121 = scmp.ne.s32.totalorder %s113, %s116
    %p122 = scmp.eq.s32.totalorder %s13, 0
    %p123 = por %p121, %p122
    %p124 = scmp.ne.s32.totalorder %s113, %s116
    %p125 = scmp.eq.s32.totalorder %s18, 3
    %p126 = por %p124, %p125
    %p127 = scmp.ne.s32.totalorder %s116, %s117
    %p128 = scmp.eq.s32.totalorder %s18, 0
    %p129 = por %p127, %p128
    %p130 = scmp.ne.s32.totalorder %s116, %s117
    %p131 = scmp.eq.s32.totalorder %s19, 3
    %p132 = por %p130, %p131
    %p134 = scmp.ne.s32.totalorder %s117, %s133
    %p135 = scmp.eq.s32.totalorder %s19, 0
    %p136 = por %p134, %p135
    %s137 = ssub.s32 %s21, %s28
    %s138 = ssub.s32 %s20, %s32
    %s139 = sor.u32 %s137, %s138
    %p140 = scmp.eq.s32.totalorder %s139, 0
    %s142 = sadd.s32 %s141, 1
    %s143 = scalar_select %p140, %s141, %s142
    %p146 = pneg %p140
    %p147 = scmp.eq.s32.totalorder %s13, 3
    %p148 = por %p146, %p147
    %p149 = scmp.ne.s32.totalorder %s141, %s144
    %p150 = scmp.eq.s32.totalorder %s13, 0
    %p151 = por %p149, %p150
    %p152 = scmp.ne.s32.totalorder %s141, %s144
    %p153 = scmp.eq.s32.totalorder %s18, 3
    %p154 = por %p152, %p153
    %p155 = scmp.ne.s32.totalorder %s144, %s145
    %p156 = scmp.eq.s32.totalorder %s18, 0
    %p157 = por %p155, %p156
    %p158 = scmp.ne.s32.totalorder %s144, %s145
    %p159 = scmp.eq.s32.totalorder %s19, 3
    %p160 = por %p158, %p159
    %p162 = scmp.ne.s32.totalorder %s145, %s161
    %p163 = scmp.eq.s32.totalorder %s19, 0
    %p164 = por %p162, %p163
    %s165 = ssub.s32 %s21, %s28
    %s166 = ssub.s32 %s20, %s32
    %s167 = sor.u32 %s165, %s166
    %p168 = scmp.eq.s32.totalorder %s167, 0
    %s170 = sadd.s32 %s169, 1
    %s171 = scalar_select %p168, %s169, %s170
    %p174 = pneg %p168
    %p175 = scmp.eq.s32.totalorder %s13, 3
    %p176 = por %p174, %p175
    %p177 = scmp.ne.s32.totalorder %s169, %s172
    %p178 = scmp.eq.s32.totalorder %s13, 0
    %p179 = por %p177, %p178
    %p180 = scmp.ne.s32.totalorder %s169, %s172
    %p181 = scmp.eq.s32.totalorder %s18, 3
    %p182 = por %p180, %p181
    %p183 = scmp.ne.s32.totalorder %s172, %s173
    %p184 = scmp.eq.s32.totalorder %s18, 0
    %p185 = por %p183, %p184
    %p186 = scmp.ne.s32.totalorder %s172, %s173
    %p187 = scmp.eq.s32.totalorder %s19, 3
    %p188 = por %p186, %p187
    %p190 = scmp.ne.s32.totalorder %s173, %s189
    %p191 = scmp.eq.s32.totalorder %s19, 0
    %p192 = por %p190, %p191
    %s193 = ssub.s32 %s21, %s28
    %s194 = ssub.s32 %s20, %s32
    %s195 = sor.u32 %s193, %s194
    %p196 = scmp.eq.s32.totalorder %s195, 0
    %s198 = sadd.s32 %s197, 1
    %s199 = scalar_select %p196, %s197, %s198
    %p202 = pneg %p196
    %p203 = scmp.eq.s32.totalorder %s13, 3
    %p204 = por %p202, %p203
    %p205 = scmp.ne.s32.totalorder %s197, %s200
    %p206 = scmp.eq.s32.totalorder %s13, 0
    %p207 = por %p205, %p206
    %p208 = scmp.ne.s32.totalorder %s197, %s200
    %p209 = scmp.eq.s32.totalorder %s18, 3
    %p210 = por %p208, %p209
    %p211 = scmp.ne.s32.totalorder %s200, %s201
    %p212 = scmp.eq.s32.totalorder %s18, 0
    %p213 = por %p211, %p212
    %p214 = scmp.ne.s32.totalorder %s200, %s201
    %p215 = scmp.eq.s32.totalorder %s19, 3
    %p216 = por %p214, %p215
    %p218 = scmp.ne.s32.totalorder %s201, %s217
    %p219 = scmp.eq.s32.totalorder %s19, 0
    %p220 = por %p218, %p219
    %p221 = scmp.le.s32.totalorder 1, %s13
    %p222 = scmp.lt.s32.totalorder %s13, 5
    %p223 = pnand %p221, %p222
    %p224 = pneg %p223
    // Predicated region
    $region9: #{tpu_custom_call.1} parent=5 // pred_check
      _
    $region10: #{tpu_custom_call.1} parent=5 // pred_check_branch
      %226 = sbr.rel (%p223) target = $region12
    $region11: #{tpu_custom_call.1} parent=5 // pred_region
      %s227 = ssub.s32 %s13, 1
      // Predicated region
      $region13: #{tpu_custom_call.1} parent=11 // pred_check
        %p228 = pneg %p51
      $region14: #{tpu_custom_call.1} parent=11 // pred_check_branch
        %230 = sbr.rel (%p228) target = $region16
      $region15: #{tpu_custom_call.1} parent=11 // pred_region
        %s231 = smul.u32 2, %s22
        %p232 = scmp.lt.s32.totalorder %s231, 1
        %s233 = scalar_select %p232, %s231, 1
        %s234 = smul.addr %s233, 8
        %s235 = scalar_lea.vmem %s0, %s234
        %s236 = smul.u32 2, %s22
      $region16: #{tpu_custom_call.1} parent=11 // pred_fallthru
        _
    $region12: #{tpu_custom_call.1} parent=5 // pred_fallthru
      _
    %p237 = scmp.lt.s32.totalorder %s13, 4
    // Predicated region
    $region17: #{tpu_custom_call.1} parent=5 // pred_check
      %p238 = pneg %p237
    $region18: #{tpu_custom_call.1} parent=5 // pred_check_branch
      %240 = sbr.rel (%p238) target = $region20
    $region19: #{tpu_custom_call.1} parent=5 // pred_region
      // Predicated region
      $region21: #{tpu_custom_call.1} parent=19 // pred_check
        %p241 = pneg %p71
      $region22: #{tpu_custom_call.1} parent=19 // pred_check_branch
        %243 = sbr.rel (%p241) target = $region24
      $region23: #{tpu_custom_call.1} parent=19 // pred_region
        %p244 = scmp.lt.s32.totalorder %s21, 3
        %s245 = scalar_select %p244, %s21, 3
        %s246 = smul.addr %s245, 4
        %s247 = smul.addr %s246, 8
        %s248 = scalar_lea.vmem %s1, %s247
      $region24: #{tpu_custom_call.1} parent=19 // pred_fallthru
        _
      // Predicated region
      $region25: #{tpu_custom_call.1} parent=19 // pred_check
        %p249 = pneg %p97
      $region26: #{tpu_custom_call.1} parent=19 // pred_check_branch
        %251 = sbr.rel (%p249) target = $region28
      $region27: #{tpu_custom_call.1} parent=19 // pred_region
        %p252 = scmp.lt.s32.totalorder %s21, 3
        %s253 = scalar_select %p252, %s21, 3
        %s254 = smul.addr %s253, 4
        %s255 = smul.addr %s254, 8
        %s256 = scalar_lea.vmem %s2, %s255
      $region28: #{tpu_custom_call.1} parent=19 // pred_fallthru
        _
      // Predicated region
      $region29: #{tpu_custom_call.1} parent=19 // pred_check
        %p257 = pneg %p123
      $region30: #{tpu_custom_call.1} parent=19 // pred_check_branch
        %259 = sbr.rel (%p257) target = $region32
      $region31: #{tpu_custom_call.1} parent=19 // pred_region
        %p260 = scmp.lt.s32.totalorder %s21, 3
        %s261 = scalar_select %p260, %s21, 3
        %s262 = smul.addr %s261, 4
        %s263 = smul.addr %s262, 8
        %s264 = scalar_lea.vmem %s3, %s263
      $region32: #{tpu_custom_call.1} parent=19 // pred_fallthru
        _
    $region20: #{tpu_custom_call.1} parent=5 // pred_fallthru
      _
    %p265 = scmp.le.s32.totalorder 1, %s13
    %p266 = scmp.lt.s32.totalorder %s13, 5
    %p267 = pnand %p265, %p266
    %p268 = pneg %p267
    // Predicated region
    $region33: #{tpu_custom_call.1} parent=5 // pred_check
      _
    $region34: #{tpu_custom_call.1} parent=5 // pred_check_branch
      %270 = sbr.rel (%p267) target = $region36
    $region35: #{tpu_custom_call.1} parent=5 // pred_region
      %s271 = ssub.s32 %s13, 1
      %s272 = smul.u32 2, %s22
      %p273 = scmp.lt.s32.totalorder %s272, 1
      %s274 = scalar_select %p273, %s272, 1
      %s275 = smul.addr %s274, 8
      %s276 = scalar_lea.vmem %s0, %s275
      %p277 = pneg %p51
      %p278 = pneg %p48
      %p279 = scmp.lt.s32.totalorder %s23, 3
      %s280 = scalar_select %p279, %s23, 3
      %s281 = smul.addr %s280, 4
      %s282 = smul.addr %s281, 8
      %s283 = scalar_lea.vmem %s1, %s282
      %p284 = pneg %p77
      %p285 = pneg %p74
      %p286 = scmp.lt.s32.totalorder %s23, 3
      %s287 = scalar_select %p286, %s23, 3
      %s288 = smul.addr %s287, 4
      %s289 = smul.addr %s288, 8
      %s290 = scalar_lea.vmem %s2, %s289
      %p291 = pneg %p103
      %p292 = pneg %p100
      %p293 = scmp.lt.s32.totalorder %s23, 3
      %s294 = scalar_select %p293, %s23, 3
      %s295 = smul.addr %s294, 4
      %s296 = smul.addr %s295, 8
      %s297 = scalar_lea.vmem %s3, %s296
      %p298 = pneg %p129
      %p299 = pneg %p126
      %p300 = pneg %p157
      %p301 = pneg %p154
      %s302 = smul.u32 2, %s22
      %p303 = scmp.lt.s32.totalorder %s23, 3
      %s304 = scalar_select %p303, %s23, 3
      %p305 = scmp.lt.s32.totalorder %s302, 1
      %s306 = scalar_select %p305, %s302, 1
      %s307 = smul.addr %s304, 2
      %s308 = sadd.s32 %s306, %s307
      %s309 = smul.addr %s308, 8
      %s310 = scalar_lea.vmem %s4, %s309
      %p311 = pneg %p185
      %p312 = pneg %p182
      %s313 = smul.u32 2, %s22
      %p314 = scmp.lt.s32.totalorder %s23, 3
      %s315 = scalar_select %p314, %s23, 3
      %p316 = scmp.lt.s32.totalorder %s313, 1
      %s317 = scalar_select %p316, %s313, 1
      %s318 = smul.addr %s315, 2
      %s319 = sadd.s32 %s317, %s318
      %s320 = smul.addr %s319, 8
      %s321 = scalar_lea.vmem %s5, %s320
      %p322 = pneg %p213
      %p323 = pneg %p210
      %s324 = smul.u32 2, %s22
      %p325 = scmp.lt.s32.totalorder %s23, 3
      %s326 = scalar_select %p325, %s23, 3
      %p327 = scmp.lt.s32.totalorder %s324, 1
      %s328 = scalar_select %p327, %s324, 1
      %s329 = smul.addr %s326, 2
      %s330 = sadd.s32 %s328, %s329
      %s331 = smul.addr %s330, 8
      %s332 = scalar_lea.vmem %s6, %s331
      %s333 = smul.u32 2, %s22
      %p334 = scmp.lt.s32.totalorder %s333, 1
      %s335 = scalar_select %p334, %s333, 1
      %s336 = smul.addr %s335, 8
      %s337 = scalar_lea.vmem %s0, %s336
      %s338 = smul.u32 2, %s22
      %p339 = scmp.lt.s32.totalorder %s23, 3
      %s340 = scalar_select %p339, %s23, 3
      %s341 = smul.addr %s340, 4
      %s342 = smul.addr %s341, 8
      %s343 = scalar_lea.vmem %s1, %s342
      %p344 = scmp.lt.s32.totalorder %s23, 3
      %s345 = scalar_select %p344, %s23, 3
      %s346 = smul.addr %s345, 4
      %s347 = smul.addr %s346, 8
      %s348 = scalar_lea.vmem %s2, %s347
      %p349 = scmp.lt.s32.totalorder %s23, 3
      %s350 = scalar_select %p349, %s23, 3
      %s351 = smul.addr %s350, 4
      %s352 = smul.addr %s351, 8
      %s353 = scalar_lea.vmem %s3, %s352
      %s354 = smul.u32 2, %s22
      %p355 = scmp.lt.s32.totalorder %s23, 3
      %s356 = scalar_select %p355, %s23, 3
      %p357 = scmp.lt.s32.totalorder %s354, 1
      %s358 = scalar_select %p357, %s354, 1
      %s359 = smul.addr %s356, 2
      %s360 = sadd.s32 %s358, %s359
      %s361 = smul.addr %s360, 8
      %s362 = scalar_lea.vmem %s4, %s361
      %s363 = smul.u32 2, %s22
      %s364 = smul.u32 2, %s22
      %p365 = scmp.lt.s32.totalorder %s23, 3
      %s366 = scalar_select %p365, %s23, 3
      %p367 = scmp.lt.s32.totalorder %s364, 1
      %s368 = scalar_select %p367, %s364, 1
      %s369 = smul.addr %s366, 2
      %s370 = sadd.s32 %s368, %s369
      %s371 = smul.addr %s370, 8
      %s372 = scalar_lea.vmem %s5, %s371
      %s373 = smul.u32 2, %s22
      %s374 = smul.u32 2, %s22
      %p375 = scmp.lt.s32.totalorder %s23, 3
      %s376 = scalar_select %p375, %s23, 3
      %p377 = scmp.lt.s32.totalorder %s374, 1
      %s378 = scalar_select %p377, %s374, 1
      %s379 = smul.addr %s376, 2
      %s380 = sadd.s32 %s378, %s379
      %s381 = smul.addr %s380, 8
      %s382 = scalar_lea.vmem %s6, %s381
      %s383 = smul.u32 2, %s22
      %v384 = vld [vmem:[%s337] sm:$0xff]
      %v385 = vld [vmem:[%s337 + $0x8] sm:$0xff]
      %v386 = vld [vmem:[%s343] sm:$0xff]
      %v387 = vld [vmem:[%s343 + $0x8] sm:$0xff]
      %v388 = vld [vmem:[%s343 + $0x10] sm:$0xff]
      %v389 = vld [vmem:[%s343 + $0x18] sm:$0xff]
      %vm390 = vcmask 261120
      %v392 = vsel %vm390, %v384, 0
      %v395 = vsel %vm390, %v385, 0
      %397 = vmatpush.msra.mxu0 0.0
      %398 = vmatpush.msra.mxu0 0.0
      %399 = vmatpush.msra.mxu0 0.0
      %400 = vmatpush.msra.mxu0 0.0
      %401 = vmatpush.msra.mxu0 0.0
      %402 = vmatpush.msra.mxu0 0.0
      %403 = vmatpush.msra.mxu0 0.0
      %404 = vmatpush.msra.mxu0 0.0
      %405 = vmatpush.msra.mxu0 0.0
      %406 = vmatpush.msra.mxu0 0.0
      %407 = vmatpush.msra.mxu0 0.0
      %408 = vmatpush.msra.mxu0 0.0
      %409 = vmatpush.msra.mxu0 %v389
      %410 = vmatpush.msra.mxu0 %v388
      %411 = vmatpush.msra.mxu0 %v387
      %412 = vmatpush.msra.mxu0 %v386
      %413 = vmatmul.f32.gmra.mxu0 %v392
      %v414 = vpop.f32.mrf.mxu0
      %v415 = vadd.f32 0.0, %v414
      %416 = vmatmul.f32.gmra.mxu0 %v395
      %v417 = vpop.f32.mrf.mxu0
      %v418 = vadd.f32 0.0, %v417
      %419 = vdwg.mxu0
      %vm420 = vcmask 64512
      %421 = vst.msk [vmem:[%s362] sm:$0xff] %vm420, %v415
      %422 = vst.msk [vmem:[%s362 + $0x8] sm:$0xff] %vm420, %v418
      %v423 = vld [vmem:[%s348] sm:$0xff]
      %v424 = vld [vmem:[%s348 + $0x8] sm:$0xff]
      %v425 = vld [vmem:[%s348 + $0x10] sm:$0xff]
      %v426 = vld [vmem:[%s348 + $0x18] sm:$0xff]
      %427 = vmatpush.msra.mxu0 0.0
      %428 = vmatpush.msra.mxu0 0.0
      %429 = vmatpush.msra.mxu0 0.0
      %430 = vmatpush.msra.mxu0 0.0
      %431 = vmatpush.msra.mxu0 0.0
      %432 = vmatpush.msra.mxu0 0.0
      %433 = vmatpush.msra.mxu0 0.0
      %434 = vmatpush.msra.mxu0 0.0
      %435 = vmatpush.msra.mxu0 0.0
      %436 = vmatpush.msra.mxu0 0.0
      %437 = vmatpush.msra.mxu0 0.0
      %438 = vmatpush.msra.mxu0 0.0
      %439 = vmatpush.msra.mxu0 %v426
      %440 = vmatpush.msra.mxu0 %v425
      %441 = vmatpush.msra.mxu0 %v424
      %442 = vmatpush.msra.mxu0 %v423
      %443 = vmatmul.f32.gmra.mxu0 %v392
      %v444 = vpop.f32.mrf.mxu0
      %v445 = vadd.f32 0.0, %v444
      %446 = vmatmul.f32.gmra.mxu0 %v395
      %v447 = vpop.f32.mrf.mxu0
      %v448 = vadd.f32 0.0, %v447
      %449 = vdwg.mxu0
      %450 = vst.msk [vmem:[%s372] sm:$0xff] %vm420, %v445
      %451 = vst.msk [vmem:[%s372 + $0x8] sm:$0xff] %vm420, %v448
      %v452 = vld [vmem:[%s353] sm:$0xff]
      %v453 = vld [vmem:[%s353 + $0x8] sm:$0xff]
      %v454 = vld [vmem:[%s353 + $0x10] sm:$0xff]
      %v455 = vld [vmem:[%s353 + $0x18] sm:$0xff]
      %456 = vmatpush.msra.mxu0 0.0
      %457 = vmatpush.msra.mxu0 0.0
      %458 = vmatpush.msra.mxu0 0.0
      %459 = vmatpush.msra.mxu0 0.0
      %460 = vmatpush.msra.mxu0 0.0
      %461 = vmatpush.msra.mxu0 0.0
      %462 = vmatpush.msra.mxu0 0.0
      %463 = vmatpush.msra.mxu0 0.0
      %464 = vmatpush.msra.mxu0 0.0
      %465 = vmatpush.msra.mxu0 0.0
      %466 = vmatpush.msra.mxu0 0.0
      %467 = vmatpush.msra.mxu0 0.0
      %468 = vmatpush.msra.mxu0 %v455
      %469 = vmatpush.msra.mxu0 %v454
      %470 = vmatpush.msra.mxu0 %v453
      %471 = vmatpush.msra.mxu0 %v452
      %472 = vmatmul.f32.gmra.mxu0 %v392
      %v473 = vpop.f32.mrf.mxu0
      %v474 = vadd.f32 0.0, %v473
      %475 = vmatmul.f32.gmra.mxu0 %v395
      %v476 = vpop.f32.mrf.mxu0
      %v477 = vadd.f32 0.0, %v476
      %478 = vdwg.mxu0
      %479 = vst.msk [vmem:[%s382] sm:$0xff] %vm420, %v474
      %480 = vst.msk [vmem:[%s382 + $0x8] sm:$0xff] %vm420, %v477
      %s481 = smul.u32 2, %s22
      %p482 = scmp.lt.s32.totalorder %s23, 3
      %s483 = scalar_select %p482, %s23, 3
      %p484 = scmp.lt.s32.totalorder %s481, 1
      %s485 = scalar_select %p484, %s481, 1
      %s486 = smul.addr %s483, 2
      %s487 = sadd.s32 %s485, %s486
      %s488 = smul.addr %s487, 8
      %s489 = scalar_lea.vmem %s4, %s488
      %s490 = smul.u32 2, %s22
      %p491 = scmp.lt.s32.totalorder %s23, 3
      %s492 = scalar_select %p491, %s23, 3
      %p493 = scmp.lt.s32.totalorder %s490, 1
      %s494 = scalar_select %p493, %s490, 1
      %s495 = smul.addr %s492, 2
      %s496 = sadd.s32 %s494, %s495
      %s497 = smul.addr %s496, 8
      %s498 = scalar_lea.vmem %s5, %s497
      %s499 = smul.u32 2, %s22
      %p500 = scmp.lt.s32.totalorder %s23, 3
      %s501 = scalar_select %p500, %s23, 3
      %p502 = scmp.lt.s32.totalorder %s499, 1
      %s503 = scalar_select %p502, %s499, 1
      %s504 = smul.addr %s501, 2
      %s505 = sadd.s32 %s503, %s504
      %s506 = smul.addr %s505, 8
      %s507 = scalar_lea.vmem %s6, %s506
      // Predicated region
      $region37: #{tpu_custom_call.1} parent=35 // pred_check
        %p508 = pneg %p154
      $region38: #{tpu_custom_call.1} parent=35 // pred_check_branch
        %510 = sbr.rel (%p508) target = $region40
      $region39: #{tpu_custom_call.1} parent=35 // pred_region
        %s511 = smul.u32 2, %s22
      $region40: #{tpu_custom_call.1} parent=35 // pred_fallthru
        _
      // Predicated region
      $region41: #{tpu_custom_call.1} parent=35 // pred_check
        %p512 = pneg %p182
      $region42: #{tpu_custom_call.1} parent=35 // pred_check_branch
        %514 = sbr.rel (%p512) target = $region44
      $region43: #{tpu_custom_call.1} parent=35 // pred_region
        %s515 = smul.u32 2, %s22
      $region44: #{tpu_custom_call.1} parent=35 // pred_fallthru
        _
      // Predicated region
      $region45: #{tpu_custom_call.1} parent=35 // pred_check
        %p516 = pneg %p210
      $region46: #{tpu_custom_call.1} parent=35 // pred_check_branch
        %518 = sbr.rel (%p516) target = $region48
      $region47: #{tpu_custom_call.1} parent=35 // pred_region
        %s519 = smul.u32 2, %s22
      $region48: #{tpu_custom_call.1} parent=35 // pred_fallthru
        _
    $region36: #{tpu_custom_call.1} parent=5 // pred_fallthru
      _
    %p520 = scmp.le.s32.totalorder 2, %s13
    // Predicated region
    $region49: #{tpu_custom_call.1} parent=5 // pred_check
      %p521 = pneg %p520
    $region50: #{tpu_custom_call.1} parent=5 // pred_check_branch
      %523 = sbr.rel (%p521) target = $region52
    $region51: #{tpu_custom_call.1} parent=5 // pred_region
      %s524 = ssub.s32 %s13, 2
      // Predicated region
      $region53: #{tpu_custom_call.1} parent=51 // pred_check
        %p525 = pneg %p160
      $region54: #{tpu_custom_call.1} parent=51 // pred_check_branch
        %527 = sbr.rel (%p525) target = $region56
      $region55: #{tpu_custom_call.1} parent=51 // pred_region
        %s528 = smul.u32 2, %s24
        %p529 = scmp.lt.s32.totalorder %s25, 3
        %s530 = scalar_select %p529, %s25, 3
        %p531 = scmp.lt.s32.totalorder %s528, 1
        %s532 = scalar_select %p531, %s528, 1
        %s533 = smul.addr %s530, 2
        %s534 = sadd.s32 %s532, %s533
        %s535 = smul.addr %s534, 8
        %s536 = scalar_lea.vmem %s4, %s535
      $region56: #{tpu_custom_call.1} parent=51 // pred_fallthru
        _
      // Predicated region
      $region57: #{tpu_custom_call.1} parent=51 // pred_check
        %p537 = pneg %p188
      $region58: #{tpu_custom_call.1} parent=51 // pred_check_branch
        %539 = sbr.rel (%p537) target = $region60
      $region59: #{tpu_custom_call.1} parent=51 // pred_region
        %s540 = smul.u32 2, %s24
        %p541 = scmp.lt.s32.totalorder %s25, 3
        %s542 = scalar_select %p541, %s25, 3
        %p543 = scmp.lt.s32.totalorder %s540, 1
        %s544 = scalar_select %p543, %s540, 1
        %s545 = smul.addr %s542, 2
        %s546 = sadd.s32 %s544, %s545
        %s547 = smul.addr %s546, 8
        %s548 = scalar_lea.vmem %s5, %s547
      $region60: #{tpu_custom_call.1} parent=51 // pred_fallthru
        _
      // Predicated region
      $region61: #{tpu_custom_call.1} parent=51 // pred_check
        %p549 = pneg %p216
      $region62: #{tpu_custom_call.1} parent=51 // pred_check_branch
        %551 = sbr.rel (%p549) target = $region64
      $region63: #{tpu_custom_call.1} parent=51 // pred_region
        %s552 = smul.u32 2, %s24
        %p553 = scmp.lt.s32.totalorder %s25, 3
        %s554 = scalar_select %p553, %s25, 3
        %p555 = scmp.lt.s32.totalorder %s552, 1
        %s556 = scalar_select %p555, %s552, 1
        %s557 = smul.addr %s554, 2
        %s558 = sadd.s32 %s556, %s557
        %s559 = smul.addr %s558, 8
        %s560 = scalar_lea.vmem %s6, %s559
      $region64: #{tpu_custom_call.1} parent=51 // pred_fallthru
        _
    $region52: #{tpu_custom_call.1} parent=5 // pred_fallthru
      _
  $region6: #{tpu_custom_call.1} parent=0 // loop_footer
    %s17 = sadd.s32 1, %s13
  $region7: #{tpu_custom_call.1} parent=0 // loop_footer_branch
    %12 = sbr.rel target = $region3
  $region8: #{tpu_custom_call.1} parent=0 // loop_exit
    _

</llo_original>
